<compile_context>
chip_gen: v7x
topology: tpu7x:2x2x1
jax: 0.10.0
libtpu: 0.0.40
codegen_flags: <defaults>
</compile_context>

<pallas_src>
import functools

import jax
import jax.numpy as jnp
from jax import lax
from jax.experimental import pallas as pl
from jax.experimental.pallas import tpu as pltpu


def _round_up(a, b):
    return (a + b - 1) // b * b


def _tpu_defaults():
    """Best-effort TPU generation / VMEM query; falls back to safe defaults."""
    kind = ""
    try:
        kind = (jax.devices()[0].device_kind or "").lower()
    except Exception:
        pass
    two_tc = "7" in kind                 # v7x: 2 TensorCores, 64 MiB VMEM per TC
    is_v5e = "v5" in kind
    vmem_cap = None
    try:
        vmem_cap = int(pltpu.get_tpu_info().vmem_capacity_bytes)
    except Exception:
        pass
    if not vmem_cap or vmem_cap <= 0:
        vmem_cap = (64 if (two_tc or not kind) else 128) * 1024 * 1024
    if two_tc:                           # guard against per-chip reporting
        vmem_cap = min(vmem_cap, 64 * 1024 * 1024)
    return kind, vmem_cap, is_v5e, two_tc


def _const_spec(shape):
    """BlockSpec for a grid-invariant operand (constant index_map).

    Requests single buffering (pl.Buffered(1)) so only one VMEM copy of the
    weights stays resident; falls back to the default (double-buffered) spec on
    jax versions without BlockSpec(pipeline_mode=...).
    Returns (spec, buffer_count_assumed_for_vmem_budget).
    """
    index_map = lambda i: (0,) * len(shape)
    try:
        return pl.BlockSpec(shape, index_map, pipeline_mode=pl.Buffered(1)), 1
    except Exception:
        return pl.BlockSpec(shape, index_map), 2


def _patch_embed_kernel(xp_ref, w_ref, b_ref, o_ref):
    """xp_ref: (tm, Kp)  flattened (p2, C, p0, p1) patches (bf16/f32)
       w_ref : (Kp, Ep)  folded conv1*conv2 weight
       b_ref : (1, Ep)   folded bias (f32)
       o_ref : (tm, Ep)  output rows (b, gh, gw, gd) x embed
    """
    acc = jnp.dot(xp_ref[...], w_ref[...], preferred_element_type=jnp.float32)
    o_ref[...] = (acc + b_ref[...]).astype(o_ref.dtype)


def patch_embed_2p1d(x, w1, b1, w2, b2, patch_size, *,
                     tm_cap=2048, compute_dtype=jnp.bfloat16, out_dtype=None):
    """PatchEmbed2P1D forward (flatten=True, norm_layer=None -> Identity).

    x : (B, C, H, W, D)
    w1: (E, C, p0, p1, 1), b1: (E,)  -- Conv3d(in_chans, E, k=s=(p0,p1,1))
    w2: (E, E, 1, 1, p2),  b2: (E,)  -- Conv3d(E, E,  k=s=(1,1,p2))
    returns (B, num_patches, E)
    """
    p0, p1, p2 = patch_size
    B, C, H, W, D = x.shape
    assert H % p0 == 0 and W % p1 == 0 and D % p2 == 0, "image/patch mismatch"
    gh, gw, gd = H // p0, W // p1, D // p2
    E = w1.shape[0]
    K1 = C * p0 * p1
    Kp = p2 * K1                          # folded contraction dim
    M = B * gh * gw * gd                  # one row per output patch
    out_dtype = x.dtype if out_dtype is None else jnp.dtype(out_dtype)

    kind, vmem_cap, is_v5e, two_tc = _tpu_defaults()
    # Lane-dense, MXU-aligned embed columns: 128 on v5e (4x128^2 MXUs),
    # 256 on v6e/v7x (2x256^2 MXUs) when E is large enough to benefit.
    lane_gran = 128 if (is_v5e or E <= 128) else 256
    Ep = _round_up(E, lane_gran)

    # ---- patch extraction (layout glue, stays in XLA) ----------------------
    # Under jit the bf16 cast fuses into the transpose so only bf16 is written.
    # TODO(synk): fold the extraction into the pallas_call (grid over (B,gh,gw)
    # blocks of x with an in-kernel flatten) to drop this HBM round trip.
    xp = x.reshape(B, C, gh, p0, gw, p1, gd, p2)
    xp = xp.transpose(0, 2, 4, 6, 7, 1, 3, 5)        # (B, gh, gw, gd, p2, C, p0, p1)
    xp = xp.reshape(M, Kp).astype(compute_dtype)

    # ---- fold conv1 into conv2 (f32 fold, single cast to compute dtype) -----
    w1_mat = w1.reshape(E, K1).T.astype(jnp.float32)                         # (K1, E_in)
    w2_mat = jnp.transpose(w2[:, :, 0, 0, :], (2, 1, 0)).astype(jnp.float32)  # (p2, E_in, E_out)
    w_fold = jnp.einsum("ki,jio->jko", w1_mat, w2_mat,
                        precision=lax.Precision.HIGHEST)                     # (p2, K1, E)
    w_fold = w_fold.reshape(Kp, E)
    b_fold = b2.astype(jnp.float32) + jnp.dot(
        b1.astype(jnp.float32), w2_mat.sum(axis=0),
        precision=lax.Precision.HIGHEST)                                     # (E,)
    if Ep != E:
        w_fold = jnp.pad(w_fold, ((0, 0), (0, Ep - E)))
        b_fold = jnp.pad(b_fold, (0, Ep - E))
    w_fold = w_fold.astype(compute_dtype)
    b_fold = b_fold.reshape(1, Ep).astype(jnp.float32)    # bias add stays f32

    # ---- grid-invariant operands: single resident VMEM copy when supported --
    w_spec, w_bufs = _const_spec((Kp, Ep))
    b_spec, _ = _const_spec((1, Ep))

    # ---- generation-aware VMEM budget & row-tile selection -------------------
    cbytes = jnp.dtype(compute_dtype).itemsize
    obytes = jnp.dtype(out_dtype).itemsize
    # v7x: 64 MiB/TC -> ~56 MiB limit / ~48 MiB tile budget; v5e/v6e: ~100/92 MiB.
    vmem_limit = max(min(vmem_cap - 8 * 1024 * 1024, 100 * 1024 * 1024),
                     32 * 1024 * 1024)
    budget = vmem_limit - 8 * 1024 * 1024

    def vmem_bytes(t):
        return (2 * t * Kp * cbytes                        # double-buffered input tile
                + w_bufs * (Kp * Ep * cbytes + Ep * 4)     # resident folded weight/bias
                + 2 * t * Ep * obytes                      # double-buffered output tile
                + t * Ep * 4)                              # f32 matmul result before cast

    # TODO(synk): split Kp over a reduction grid axis if the folded weight ever
    # outgrows VMEM (not the case for realistic patch-embed sizes).
    tm = max(16, min(_round_up(tm_cap, 16), _round_up(M, 16)))
    while tm > 16 and vmem_bytes(tm) > budget:
        tm = max(16, _round_up(tm // 2, 16))
    # v7x: keep >= 4 row tiles so dimension_semantics=("parallel",) can shard
    # the grid across both TensorCores.
    min_steps = 4 if two_tc else 1
    while tm > 256 and pl.cdiv(M, tm) < min_steps:
        tm = max(16, _round_up(tm // 2, 16))
    # Prefer a tm that divides M: dense last tile, no masked boundary step.
    if M % tm != 0:
        for d in range(tm, max(16, tm // 2) - 1, -1):
            if M % d == 0 and d % 8 == 0:
                tm = d
                break
    grid_m = pl.cdiv(M, tm)       # ragged last tile (if any) is masked by Pallas

    flops = 2 * M * Kp * Ep
    bytes_accessed = (M * Kp * cbytes + Kp * Ep * cbytes + Ep * 4
                      + M * Ep * obytes)

    out = pl.pallas_call(
        _patch_embed_kernel,
        out_shape=jax.ShapeDtypeStruct((M, Ep), out_dtype),
        grid=(grid_m,),
        in_specs=[
            pl.BlockSpec((tm, Kp), lambda i: (i, 0)),      # patch rows
            w_spec,                                        # folded weight (resident)
            b_spec,                                        # folded bias   (resident)
        ],
        out_specs=pl.BlockSpec((tm, Ep), lambda i: (i, 0)),
        compiler_params=pltpu.CompilerParams(
            dimension_semantics=("parallel",),
            vmem_limit_bytes=int(vmem_limit)),
        cost_estimate=pl.CostEstimate(
            flops=int(flops), transcendentals=0,
            bytes_accessed=int(bytes_accessed)),
    )(xp, w_fold, b_fold)

    if Ep != E:                    # lane padding only; rows are never padded/sliced
        out = out[:, :E]
    # flatten(2).transpose(1, 2): (B, num_patches, E) with gd fastest.
    return out.reshape(B, gh * gw * gd, E)


# ---------------------------------------------------------------------------
# Pure-JAX reference using real 3D convolutions (for verification).
# ---------------------------------------------------------------------------
def reference(x, w1, b1, w2, b2, patch_size):
    p0, p1, p2 = patch_size
    B = x.shape[0]
    E = w1.shape[0]
    dn = lax.conv_dimension_numbers(x.shape, w1.shape, ("NCHWD", "OIHWD", "NCHWD"))
    y = lax.conv_general_dilated(x, w1, window_strides=(p0, p1, 1), padding="VALID",
                                 dimension_numbers=dn, precision=lax.Precision.HIGHEST)
    y = y + b1.reshape(1, E, 1, 1, 1)
    dn2 = lax.conv_dimension_numbers(y.shape, w2.shape, ("NCHWD", "OIHWD", "NCHWD"))
    y = lax.conv_general_dilated(y, w2, window_strides=(1, 1, p2), padding="VALID",
                                 dimension_numbers=dn2, precision=lax.Precision.HIGHEST)
    y = y + b2.reshape(1, E, 1, 1, 1)
    return y.reshape(B, E, -1).transpose(0, 2, 1)


if __name__ == "__main__":
    # Small config consistent with the module's __init__ semantics.
    B, C = 2, 4
    img_size = (8, 8, 4)          # (H, W, D)
    patch_size = (4, 4, 2)        # (p0, p1, p2)
    E = 32                        # embed_dim
    num_patches = ((img_size[0] // patch_size[0]) * (img_size[1] // patch_size[1])
                   * (img_size[2] // patch_size[2]))

    key = jax.random.PRNGKey(0)
    k_x, k_w1, k_b1, k_w2, k_b2 = jax.random.split(key, 5)

    x = jax.random.normal(k_x, (B, C) + img_size, dtype=jnp.float32)
    # Conv3d(in_chans, E, kernel=(p0,p1,1))  weight: (E, C, p0, p1, 1)
    w1 = jax.random.normal(k_w1, (E, C, patch_size[0], patch_size[1], 1),
                           dtype=jnp.float32) * 0.05
    b1 = jax.random.normal(k_b1, (E,), dtype=jnp.float32) * 0.05
    # Conv3d(E, E, kernel=(1,1,p2))  weight: (E, E, 1, 1, p2)
    w2 = jax.random.normal(k_w2, (E, E, 1, 1, patch_size[2]),
                           dtype=jnp.float32) * 0.05
    b2 = jax.random.normal(k_b2, (E,), dtype=jnp.float32) * 0.05

    ref = reference(x, w1, b1, w2, b2, patch_size)

    # f32 matmul operands: tight check against the conv reference.
    fwd_f32 = jax.jit(functools.partial(patch_embed_2p1d, patch_size=patch_size,
                                        compute_dtype=jnp.float32))
    out_f32 = jax.block_until_ready(fwd_f32(x, w1, b1, w2, b2))
    assert out_f32.shape == ref.shape == (B, num_patches, E), (out_f32.shape, ref.shape)
    assert jnp.allclose(out_f32, ref, atol=5e-3, rtol=5e-3), \
        float(jnp.max(jnp.abs(out_f32 - ref)))

    # bf16 MXU operands (default fast path): f32 accumulation, looser tolerance.
    fwd_bf16 = jax.jit(functools.partial(patch_embed_2p1d, patch_size=patch_size))
    out_bf16 = jax.block_until_ready(fwd_bf16(x, w1, b1, w2, b2))
    assert out_bf16.shape == ref.shape
    assert jnp.allclose(out_bf16, ref, atol=2e-2, rtol=2e-2), \
        float(jnp.max(jnp.abs(out_bf16 - ref)))

    # bf16 output path (halves HBM writeback when downstream accepts bf16).
    fwd_bf16_out = jax.jit(functools.partial(patch_embed_2p1d, patch_size=patch_size,
                                             out_dtype=jnp.bfloat16))
    out_b = jax.block_until_ready(fwd_bf16_out(x, w1, b1, w2, b2))
    assert out_b.dtype == jnp.bfloat16 and out_b.shape == ref.shape
    assert jnp.allclose(out_b.astype(jnp.float32), ref, atol=3e-2, rtol=3e-2), \
        float(jnp.max(jnp.abs(out_b.astype(jnp.float32) - ref)))

    # norm_layer=None -> nn.Identity(): nothing to apply.
    print("KERNEL_OK")
</pallas_src>

<mosaic_0001>
module attributes {stable_mosaic.version = 11 : i64} {
  func.func @_patch_embed_kernel(%arg0: i32, %arg1: memref<16x128xf32, #tpu.memory_space<vmem>>, %arg2: memref<128x128xf32, #tpu.memory_space<vmem>>, %arg3: memref<1x128xf32, #tpu.memory_space<vmem>>, %arg4: memref<16x128xf32, #tpu.memory_space<vmem>>) attributes {dimension_semantics = [#tpu.dimension_semantics<parallel>], iteration_bounds = array<i64: 1>, scalar_prefetch = 0 : i64, scratch_operands = 0 : i64, tpu.core_type = #tpu.core_type<tc>, window_params = [{transform_indices = @transform_0, window_bounds = array<i64: 16, 128>}, {pipeline_mode = #tpu.pipeline_mode<synchronous>, transform_indices = @transform_1, window_bounds = array<i64: 128, 128>}, {pipeline_mode = #tpu.pipeline_mode<synchronous>, transform_indices = @transform_2, window_bounds = array<i64: 1, 128>}, {transform_indices = @transform_3, window_bounds = array<i64: 16, 128>}]} {
    %c0 = arith.constant 0 : index
    %c0_0 = arith.constant 0 : index
    %0 = vector.load %arg1[%c0, %c0_0] : memref<16x128xf32, #tpu.memory_space<vmem>>, vector<16x128xf32>
    %c0_1 = arith.constant 0 : index
    %c0_2 = arith.constant 0 : index
    %1 = vector.load %arg2[%c0_1, %c0_2] : memref<128x128xf32, #tpu.memory_space<vmem>>, vector<128x128xf32>
    %cst = arith.constant dense<0.000000e+00> : vector<16x128xf32>
    %2 = tpu.matmul %0, %1, %cst {dimension_numbers = #tpu.dot_dimension_numbers<[1], [0], [0], [1], [0, 0, 1, 1], [], []>} : vector<16x128xf32>, vector<128x128xf32>, vector<16x128xf32> -> vector<16x128xf32>
    %c0_3 = arith.constant 0 : index
    %c0_4 = arith.constant 0 : index
    %3 = vector.load %arg3[%c0_3, %c0_4] : memref<1x128xf32, #tpu.memory_space<vmem>>, vector<1x128xf32>
    %4 = vector.broadcast %3 : vector<1x128xf32> to vector<16x128xf32>
    %5 = arith.addf %2, %4 : vector<16x128xf32>
    %c0_5 = arith.constant 0 : index
    %c0_6 = arith.constant 0 : index
    %6 = vector.load %arg4[%c0_5, %c0_6] : memref<16x128xf32, #tpu.memory_space<vmem>>, vector<16x128xf32>
    tpu.vector_store %arg4[%c0_5, %c0_6], %5 {strides = array<i32>} : memref<16x128xf32, #tpu.memory_space<vmem>>, vector<16x128xf32>,
    return
  }
  func.func @transform_0(%arg0: i32) -> (i32, i32) {
    %c0_i32 = arith.constant 0 : i32
    %c0_i32_0 = arith.constant 0 : i32
    return %arg0, %c0_i32 : i32, i32
  }
  func.func @transform_1(%arg0: i32) -> (i32, i32) {
    %c0_i32 = arith.constant 0 : i32
    %c0_i32_0 = arith.constant 0 : i32
    %c0_i32_1 = arith.constant 0 : i32
    return %c0_i32, %c0_i32_0 : i32, i32
  }
  func.func @transform_2(%arg0: i32) -> (i32, i32) {
    %c0_i32 = arith.constant 0 : i32
    %c0_i32_0 = arith.constant 0 : i32
    %c0_i32_1 = arith.constant 0 : i32
    return %c0_i32, %c0_i32_0 : i32, i32
  }
  func.func @transform_3(%arg0: i32) -> (i32, i32) {
    %c0_i32 = arith.constant 0 : i32
    %c0_i32_0 = arith.constant 0 : i32
    return %arg0, %c0_i32 : i32, i32
  }
}

</mosaic_0001>

<llo_original>
// kernel: patch_embed_2p1d.1
$region0: #{patch_embed_2p1d.1}
  #allocation0 [shape = 'u32[]', space=smem, size = 0x4, offset = 0x4, fixed_abs, tag = 'smem constant byte address 0x4 - core index']
  #allocation1 [shape = 'u32[144,128]{1,0:T(1,128)}', space=vmem, size = 0x12000, scoped, tag = 'internal scratch']
  %s0 = inlined_call_operand.hbm [shape: f32[16,128], index: 0, kind: input, shape index: {}]
  %s1 = inlined_call_operand.hbm [shape: f32[128,128], index: 1, kind: input, shape index: {}]
  %s2 = inlined_call_operand.hbm [shape: f32[1,128], index: 2, kind: input, shape index: {}]
  %s3 = inlined_call_operand.hbm [shape: f32[16,128], index: 3, kind: output, shape index: {}]
  %s4 = sld [smem:[#allocation0]]
  $region34: #{patch_embed_2p1d.1} parent=0
    _
  %s6 = ssub.s32 1, %s4
  %s7 = scalar_select 0, %s6, %s4
  $region1: #{patch_embed_2p1d.1} parent=0
    #allocation2 [shape = 'u8[8192]{0}', space=vmem, size = 0x2000, scoped, tag = 'input window, operand 0, single buffered']
    #allocation3 [shape = 's32[1]{0}', space=sflag, size = 0x4, scoped, tag = 'scoped memory for patch_embed_2p1d.1']
    #allocation4 [shape = 's32[1]{0}', space=sflag, size = 0x4, scoped, tag = 'scoped memory for patch_embed_2p1d.1']
    #allocation5 [shape = 'u8[65536]{0}', space=vmem, size = 0x10000, scoped, tag = 'input window, operand 1, single buffered']
    #allocation6 [shape = 's32[1]{0}', space=sflag, size = 0x4, scoped, tag = 'scoped memory for patch_embed_2p1d.1']
    #allocation7 [shape = 'u8[512]{0}', space=vmem, size = 0x400, scoped, tag = 'input window, operand 2, single buffered']
    #allocation8 [shape = 'u8[8192]{0}', space=vmem, size = 0x2000, scoped, tag = 'output window, operand 0, single buffered']
    %8 = vsyncpa [#allocation3], 0
    %9 = vsyncpa [#allocation6], 0
    %10 = vsyncpa [#allocation4], 0
    // Predicated region
    $region2: #{patch_embed_2p1d.1} parent=1 // pred_check
      _
    $region3: #{patch_embed_2p1d.1} parent=1 // pred_check_branch
      %12 = sbr.rel (0) target = $region5
    $region4: #{patch_embed_2p1d.1} parent=1 // pred_region
      %s14 = ssub.s32 256, 256
      %15 = vsyncadd [#allocation3], %s14
      %s16 = sshll.u32 [#allocation2], 4
      %s17 = int_to_ptr.vmem [resolvable:$true] %s16
      %22 = dma.hbm_to_vmem [thread:$0]  %s0, 256, %s17, [#allocation3], 128, 128, 8
    $region5: #{patch_embed_2p1d.1} parent=1 // pred_fallthru
      _
    // Predicated region
    $region6: #{patch_embed_2p1d.1} parent=1 // pred_check
      _
    $region7: #{patch_embed_2p1d.1} parent=1 // pred_check_branch
      %24 = sbr.rel (0) target = $region9
    $region8: #{patch_embed_2p1d.1} parent=1 // pred_region
      %s26 = ssub.s32 2048, 2048
      %27 = vsyncadd [#allocation6], %s26
      %s28 = sshll.u32 [#allocation5], 4
      %s29 = int_to_ptr.vmem [resolvable:$true] %s28
      %34 = dma.hbm_to_vmem [thread:$0]  %s1, 2048, %s29, [#allocation6], 128, 128, 8
    $region9: #{patch_embed_2p1d.1} parent=1 // pred_fallthru
      _
    // Predicated region
    $region10: #{patch_embed_2p1d.1} parent=1 // pred_check
      _
    $region11: #{patch_embed_2p1d.1} parent=1 // pred_check_branch
      %36 = sbr.rel (0) target = $region13
    $region12: #{patch_embed_2p1d.1} parent=1 // pred_region
      %s38 = ssub.s32 16, 16
      %39 = vsyncadd [#allocation6], %s38
      %s41 = sshll.u32 [#allocation7], 4
      %s42 = int_to_ptr.vmem [resolvable:$true] %s41
      %44 = dma.hbm_to_vmem [thread:$0]  %s2, 16, %s42, [#allocation6]
    $region13: #{patch_embed_2p1d.1} parent=1 // pred_fallthru
      _
    // Predicated region
    $region14: #{patch_embed_2p1d.1} parent=1 // pred_check
      _
    $region15: #{patch_embed_2p1d.1} parent=1 // pred_check_branch
      %46 = sbr.rel (0) target = $region17
    $region16: #{patch_embed_2p1d.1} parent=1 // pred_region
      %47 = dma.done [#allocation3], 256
    $region17: #{patch_embed_2p1d.1} parent=1 // pred_fallthru
      _
    // Predicated region
    $region18: #{patch_embed_2p1d.1} parent=1 // pred_check
      _
    $region19: #{patch_embed_2p1d.1} parent=1 // pred_check_branch
      %49 = sbr.rel (0) target = $region21
    $region20: #{patch_embed_2p1d.1} parent=1 // pred_region
      %50 = dma.done [#allocation6], 2048
    $region21: #{patch_embed_2p1d.1} parent=1 // pred_fallthru
      _
    // Predicated region
    $region22: #{patch_embed_2p1d.1} parent=1 // pred_check
      _
    $region23: #{patch_embed_2p1d.1} parent=1 // pred_check_branch
      %52 = sbr.rel (0) target = $region25
    $region24: #{patch_embed_2p1d.1} parent=1 // pred_region
      %53 = dma.done [#allocation6], 16
    $region25: #{patch_embed_2p1d.1} parent=1 // pred_fallthru
      _
    %v54 = vld [vmem:[#allocation2] sm:$0xff]
    %v55 = vld [vmem:[#allocation2 + $0x8] sm:$0xff]
    %v56 = vld [vmem:[#allocation5] sm:$0xff]
    %v57 = vld [vmem:[#allocation5 + $0x8] sm:$0xff]
    %v58 = vld [vmem:[#allocation5 + $0x10] sm:$0xff]
    %v59 = vld [vmem:[#allocation5 + $0x18] sm:$0xff]
    %v60 = vld [vmem:[#allocation5 + $0x20] sm:$0xff]
    %v61 = vld [vmem:[#allocation5 + $0x28] sm:$0xff]
    %v62 = vld [vmem:[#allocation5 + $0x30] sm:$0xff]
    %v63 = vld [vmem:[#allocation5 + $0x38] sm:$0xff]
    %v64 = vld [vmem:[#allocation5 + $0x40] sm:$0xff]
    %v65 = vld [vmem:[#allocation5 + $0x48] sm:$0xff]
    %v66 = vld [vmem:[#allocation5 + $0x50] sm:$0xff]
    %v67 = vld [vmem:[#allocation5 + $0x58] sm:$0xff]
    %v68 = vld [vmem:[#allocation5 + $0x60] sm:$0xff]
    %v69 = vld [vmem:[#allocation5 + $0x68] sm:$0xff]
    %v70 = vld [vmem:[#allocation5 + $0x70] sm:$0xff]
    %v71 = vld [vmem:[#allocation5 + $0x78] sm:$0xff]
    %v72 = vld [vmem:[#allocation7] sm:$0x1]
    %v74 = vlaneseq
    %v75 = vshrl.u32 %v74, 7
    %v76 = vsub.s32 0, %v75
    %v77 = vrot.slane %v72, %v76
    %79 = vmatprep.subr.mxu0 0.0
    %80 = vmatpush1.msra.mxu0 %v56
    %81 = vmatprep.subr.mxu0 0.0
    %82 = vmatpush1.msra.mxu0 %v57
    %83 = vmatprep.subr.mxu0 0.0
    %84 = vmatpush1.msra.mxu0 %v58
    %85 = vmatprep.subr.mxu0 0.0
    %86 = vmatpush1.msra.mxu0 %v59
    %87 = vmatprep.subr.mxu0 0.0
    %88 = vmatpush1.msra.mxu0 %v60
    %89 = vmatprep.subr.mxu0 0.0
    %90 = vmatpush1.msra.mxu0 %v61
    %91 = vmatprep.subr.mxu0 0.0
    %92 = vmatpush1.msra.mxu0 %v62
    %93 = vmatprep.subr.mxu0 0.0
    %94 = vmatpush1.msra.mxu0 %v63
    %95 = vmatprep.subr.mxu0 0.0
    %96 = vmatpush1.msra.mxu0 %v64
    %97 = vmatprep.subr.mxu0 0.0
    %98 = vmatpush1.msra.mxu0 %v65
    %99 = vmatprep.subr.mxu0 0.0
    %100 = vmatpush1.msra.mxu0 %v66
    %101 = vmatprep.subr.mxu0 0.0
    %102 = vmatpush1.msra.mxu0 %v67
    %103 = vmatprep.subr.mxu0 0.0
    %104 = vmatpush1.msra.mxu0 %v68
    %105 = vmatprep.subr.mxu0 0.0
    %106 = vmatpush1.msra.mxu0 %v69
    %107 = vmatprep.subr.mxu0 0.0
    %108 = vmatpush1.msra.mxu0 %v70
    %109 = vmatprep.subr.mxu0 0.0
    %110 = vmatpush1.msra.mxu0 %v71
    %111 = vmatprep.subr.mxu0 0.0
    %112 = vmatpush1.msra.mxu0 0.0
    %113 = vmatprep.subr.mxu0 0.0
    %114 = vmatpush1.msra.mxu0 0.0
    %115 = vmatprep.subr.mxu0 0.0
    %116 = vmatpush1.msra.mxu0 0.0
    %117 = vmatprep.subr.mxu0 0.0
    %118 = vmatpush1.msra.mxu0 0.0
    %119 = vmatprep.subr.mxu0 0.0
    %120 = vmatpush1.msra.mxu0 0.0
    %121 = vmatprep.subr.mxu0 0.0
    %122 = vmatpush1.msra.mxu0 0.0
    %123 = vmatprep.subr.mxu0 0.0
    %124 = vmatpush1.msra.mxu0 0.0
    %125 = vmatprep.subr.mxu0 0.0
    %126 = vmatpush1.msra.mxu0 0.0
    %127 = vmatprep.subr.mxu0 0.0
    %128 = vmatpush1.msra.mxu0 0.0
    %129 = vmatprep.subr.mxu0 0.0
    %130 = vmatpush1.msra.mxu0 0.0
    %131 = vmatprep.subr.mxu0 0.0
    %132 = vmatpush1.msra.mxu0 0.0
    %133 = vmatprep.subr.mxu0 0.0
    %134 = vmatpush1.msra.mxu0 0.0
    %135 = vmatprep.subr.mxu0 0.0
    %136 = vmatpush1.msra.mxu0 0.0
    %137 = vmatprep.subr.mxu0 0.0
    %138 = vmatpush1.msra.mxu0 0.0
    %139 = vmatprep.subr.mxu0 0.0
    %140 = vmatpush1.msra.mxu0 0.0
    %141 = vmatprep.subr.mxu0 0.0
    %142 = vmatpush1.msra.mxu0 0.0
    %143 = vmatprep.mubr.f32.mxu0 0.0
    %144 = vmatmul.mubr.f32.gmra.mrb[0].mxu0 %v54
    %v145 = vpop.f32.mrb[0].mxu0
    %v146 = vadd.f32 %v77, %v145
    %v147 = vpop.f32.mrb[0].mxu0
    %148 = vmatprep.mubr.f32.mxu0 0.0
    %149 = vmatmul.mubr.f32.gmra.mrb[0].mxu0 %v55
    %v150 = vpop.f32.mrb[0].mxu0
    %v151 = vadd.f32 %v77, %v150
    %v152 = vpop.f32.mrb[0].mxu0
    %153 = vdwg.mxu0
    %154 = vst [vmem:[#allocation8] sm:$0xff] %v146
    %155 = vst [vmem:[#allocation8 + $0x8] sm:$0xff] %v151
    // Predicated region
    $region26: #{patch_embed_2p1d.1} parent=1 // pred_check
      _
    $region27: #{patch_embed_2p1d.1} parent=1 // pred_check_branch
      %157 = sbr.rel (0) target = $region29
    $region28: #{patch_embed_2p1d.1} parent=1 // pred_region
      %s159 = ssub.s32 256, 256
      %160 = vsyncadd [#allocation4], %s159
      %s161 = sshll.u32 [#allocation8], 4
      %s162 = int_to_ptr.vmem [resolvable:$true] %s161
      %167 = dma.vmem_to_hbm [thread:$0]  %s162, 256, %s3, [#allocation4], 128, 128, 8
    $region29: #{patch_embed_2p1d.1} parent=1 // pred_fallthru
      _
    // Predicated region
    $region30: #{patch_embed_2p1d.1} parent=1 // pred_check
      _
    $region31: #{patch_embed_2p1d.1} parent=1 // pred_check_branch
      %169 = sbr.rel (0) target = $region33
    $region32: #{patch_embed_2p1d.1} parent=1 // pred_region
      %170 = dma.done [#allocation4], 256
    $region33: #{patch_embed_2p1d.1} parent=1 // pred_fallthru
      _
    %171 = vsyncpa [#allocation3], 1
    %172 = vsyncpa [#allocation6], 1
    %173 = vsyncpa [#allocation4], 1

</llo_original>
